<compile_context>
chip_gen: v6e
topology: v6e:2x2x1
jax: 0.10.0
libtpu: 0.0.40
codegen_flags: <defaults>
</compile_context>

<pallas_src>
import functools

import jax
import jax.numpy as jnp
from jax.experimental import pallas as pl
from jax.experimental.pallas import tpu as pltpu


def _round_up(x, m):
    return ((x + m - 1) // m) * m


def _choose_hw_tile(C, HW, itemsize):
    """Lane-dense spatial tile: multiple of 128, <= ~4 MiB per buffer so the
    double-buffered stream stays well inside the 32 MiB default scoped VMEM
    (and v7x's 64 MiB physical VMEM)."""
    per_buffer_budget = 4 * 1024 * 1024
    t = per_buffer_budget // max(1, C * itemsize)
    t = max(128, (t // 128) * 128)
    t = min(t, 4096)                      # diminishing returns past ~4K lanes
    t = min(t, _round_up(HW, 128))        # never bigger than (padded) H*W
    return t


def _channel_attention_kernel(x_ref, w1_ref, w2t_ref, o_ref,
                              sum_ref, max_ref,
                              *, hw_total, hw_tile, inv_hw):
    # x_ref: (C, T) tile of one batch element's (C, H*W) slab
    # w1_ref: (Cr, C)   fc1 weight
    # w2t_ref: (Cr, C)  fc2 weight, pre-transposed on host
    # o_ref: (1, C)     lane-dense attention row for this batch element
    # sum_ref/max_ref: (C, 1) f32 running pooled accumulators
    k = pl.program_id(1)
    n_k = pl.num_programs(1)

    @pl.when(k == 0)
    def _init():
        sum_ref[...] = jnp.zeros(sum_ref.shape, dtype=sum_ref.dtype)
        max_ref[...] = jnp.full(max_ref.shape, -jnp.inf, dtype=max_ref.dtype)

    x = x_ref[...]                                   # (C, T), input dtype

    if hw_total % hw_tile != 0:
        # Ragged last tile: mask out-of-range lanes (0 for the sum, -inf for
        # the max) so padded lanes never corrupt the pooled statistics.
        lane = jax.lax.broadcasted_iota(jnp.int32, x.shape, 1) + k * hw_tile
        valid = lane < hw_total
        x_sum = jnp.where(valid, x, jnp.zeros_like(x))
        x_max = jnp.where(valid, x, jnp.array(-jnp.inf, dtype=x.dtype))
    else:
        x_sum = x
        x_max = x

    # Sum accumulates in f32 without upcasting the whole streamed tile; max is
    # computed in the input dtype and merged into the f32 accumulator.
    sum_ref[...] += jnp.sum(x_sum, axis=-1, keepdims=True, dtype=jnp.float32)
    tile_max = jnp.max(x_max, axis=-1, keepdims=True)
    max_ref[...] = jnp.maximum(max_ref[...], tile_max.astype(jnp.float32))

    @pl.when(k == n_k - 1)
    def _finalize():
        avg = sum_ref[...] * inv_hw                  # (C, 1) true mean
        mx = max_ref[...]                            # (C, 1)
        p = jnp.concatenate([avg, mx], axis=-1)      # (C, 2): both pooled paths
        w1 = w1_ref[...].astype(jnp.float32)         # (Cr, C)
        w2t = w2t_ref[...].astype(jnp.float32)       # (Cr, C)

        # Fused MLP: one fc1 matmul for both paths; fc2 is linear, so sum the
        # hidden columns first and run a single fc2 matvec.
        h = jnp.maximum(
            jnp.dot(w1, p, preferred_element_type=jnp.float32), 0.0)   # (Cr, 2)
        hsum = h[:, 0:1] + h[:, 1:2]                                   # (Cr, 1)
        y = jnp.dot(jnp.transpose(hsum), w2t,
                    preferred_element_type=jnp.float32)                # (1, C)
        o_ref[...] = jax.nn.sigmoid(y).astype(o_ref.dtype)


def channel_attention(x, w1, w2, *, hw_tile=None):
    """x: (B, C, H, W); w1: (C//4, C); w2: (C, C//4). Returns (B, C, 1, 1)."""
    B, C, H, W = x.shape
    Cr = w1.shape[0]
    assert w1.shape == (Cr, C) and w2.shape == (C, Cr)
    HW = H * W

    x_flat = x.reshape(B, C, HW)
    w2t = jnp.transpose(w2)                          # (Cr, C), host-side transpose

    if hw_tile is None:
        hw_tile = _choose_hw_tile(C, HW, x.dtype.itemsize)
    n_k = pl.cdiv(HW, hw_tile)

    kernel = functools.partial(
        _channel_attention_kernel,
        hw_total=HW, hw_tile=hw_tile, inv_hw=1.0 / HW)

    out = pl.pallas_call(
        kernel,
        out_shape=jax.ShapeDtypeStruct((B, 1, C), x.dtype),
        grid=(B, n_k),
        in_specs=[
            # x: stream (C, T) spatial tiles; leading batch dim squeezed.
            pl.BlockSpec((None, C, hw_tile), lambda b, k: (b, 0, k)),
            # Weights: constant index_map -> stay resident in VMEM across grid.
            pl.BlockSpec((Cr, C), lambda b, k: (0, 0)),
            pl.BlockSpec((Cr, C), lambda b, k: (0, 0)),
        ],
        # Lane-dense output row per batch element (C on the lane axis).
        out_specs=pl.BlockSpec((None, 1, C), lambda b, k: (b, 0, 0)),
        scratch_shapes=[
            pltpu.VMEM((C, 1), jnp.float32),   # running sum
            pltpu.VMEM((C, 1), jnp.float32),   # running max
        ],
        compiler_params=pltpu.CompilerParams(
            dimension_semantics=("parallel", "arbitrary")),
    )(x_flat, w1, w2t)
    return out.reshape(B, C, 1, 1)


def reference(x, w1, w2):
    # Pure-JAX reference of the PyTorch forward for validation.
    B, C, H, W = x.shape
    avg = jnp.mean(x, axis=(2, 3))                 # (B, C)
    mx = jnp.max(x, axis=(2, 3))                   # (B, C)

    def mlp(v):
        h = jnp.maximum(v @ w1.T, 0.0)             # (B, C//4)
        return h @ w2.T                            # (B, C)

    out = jax.nn.sigmoid(mlp(avg) + mlp(mx))
    return out.reshape(B, C, 1, 1)


if __name__ == "__main__":
    key = jax.random.PRNGKey(0)
    k_x, k_w1, k_w2, k_x2 = jax.random.split(key, 4)

    B, C, H, W = 2, 8, 32, 32          # in_planes=8, ratio=4 -> hidden=2
    Cr = C // 4

    x = jax.random.normal(k_x, (B, C, H, W), dtype=jnp.float32)
    w1 = jax.random.normal(k_w1, (Cr, C), dtype=jnp.float32) * (1.0 / jnp.sqrt(C))
    w2 = jax.random.normal(k_w2, (C, Cr), dtype=jnp.float32) * (1.0 / jnp.sqrt(Cr))

    ref = reference(x, w1, w2)

    # 1) Auto tile size (single spatial tile at this toy size).
    out = jax.block_until_ready(channel_attention(x, w1, w2))
    assert out.shape == (B, C, 1, 1)
    assert jnp.allclose(out, ref, atol=1e-5, rtol=1e-5), "mismatch (auto tile)"

    # 2) Multi-tile spatial accumulation path.
    out2 = jax.block_until_ready(channel_attention(x, w1, w2, hw_tile=256))
    assert jnp.allclose(out2, ref, atol=1e-5, rtol=1e-5), "mismatch (multi-tile)"

    # 3) Ragged last tile (H*W not a multiple of the tile) -> masked path.
    H3, W3 = 20, 20
    x3 = jax.random.normal(k_x2, (B, C, H3, W3), dtype=jnp.float32)
    out3 = jax.block_until_ready(channel_attention(x3, w1, w2, hw_tile=128))
    ref3 = reference(x3, w1, w2)
    assert jnp.allclose(out3, ref3, atol=1e-5, rtol=1e-5), "mismatch (ragged tile)"

    print("KERNEL_OK")
</pallas_src>

<mosaic_0001>
module attributes {stable_mosaic.version = 11 : i64} {
  func.func @_channel_attention_kernel(%arg0: i32, %arg1: i32, %arg2: memref<1x8x1024xf32, #tpu.memory_space<vmem>>, %arg3: memref<2x8xf32, #tpu.memory_space<vmem>>, %arg4: memref<2x8xf32, #tpu.memory_space<vmem>>, %arg5: memref<1x1x8xf32, #tpu.memory_space<vmem>>, %arg6: memref<8x1xf32, #tpu.memory_space<vmem>>, %arg7: memref<8x1xf32, #tpu.memory_space<vmem>>) attributes {dimension_semantics = [#tpu.dimension_semantics<parallel>, #tpu.dimension_semantics<arbitrary>], iteration_bounds = array<i64: 2, 1>, scalar_prefetch = 0 : i64, scratch_operands = 2 : i64, tpu.core_type = #tpu.core_type<tc>, window_params = [{transform_indices = @transform_0, window_bounds = array<i64: 1, 8, 1024>}, {pipeline_mode = #tpu.pipeline_mode<synchronous>, transform_indices = @transform_1, window_bounds = array<i64: 2, 8>}, {pipeline_mode = #tpu.pipeline_mode<synchronous>, transform_indices = @transform_2, window_bounds = array<i64: 2, 8>}, {transform_indices = @transform_3, window_bounds = array<i64: 1, 1, 8>}]} {
    %c0_i32 = arith.constant 0 : i32
    %0 = arith.cmpi eq, %arg1, %c0_i32 : i32
    %1 = arith.extui %0 : i1 to i32
    %c0_i32_0 = arith.constant 0 : i32
    %2 = arith.cmpi ne, %1, %c0_i32_0 : i32
    scf.if %2 {
      %cst_14 = arith.constant 0.000000e+00 : f32
      %18 = vector.broadcast %cst_14 : f32 to vector<8x1xf32>
      %c0_15 = arith.constant 0 : index
      %c0_16 = arith.constant 0 : index
      %19 = vector.load %arg6[%c0_15, %c0_16] : memref<8x1xf32, #tpu.memory_space<vmem>>, vector<8x1xf32>
      tpu.vector_store %arg6[%c0_15, %c0_16], %18 {strides = array<i32>} : memref<8x1xf32, #tpu.memory_space<vmem>>, vector<8x1xf32>,
      %cst_17 = arith.constant 0xFF800000 : f32
      %20 = vector.broadcast %cst_17 : f32 to vector<8x1xf32>
      %c0_18 = arith.constant 0 : index
      %c0_19 = arith.constant 0 : index
      %21 = vector.load %arg7[%c0_18, %c0_19] : memref<8x1xf32, #tpu.memory_space<vmem>>, vector<8x1xf32>
      tpu.vector_store %arg7[%c0_18, %c0_19], %20 {strides = array<i32>} : memref<8x1xf32, #tpu.memory_space<vmem>>, vector<8x1xf32>,
    } else {
    }
    %c0 = arith.constant 0 : index
    %c0_1 = arith.constant 0 : index
    %c0_2 = arith.constant 0 : index
    %3 = vector.load %arg2[%c0, %c0_1, %c0_2] : memref<1x8x1024xf32, #tpu.memory_space<vmem>>, vector<1x8x1024xf32>
    %4 = vector.shape_cast %3 : vector<1x8x1024xf32> to vector<8x1024xf32>
    %c0_3 = arith.constant 0 : index
    %c0_4 = arith.constant 0 : index
    %5 = vector.load %arg6[%c0_3, %c0_4] : memref<8x1xf32, #tpu.memory_space<vmem>>, vector<8x1xf32>
    %cst = arith.constant dense<0.000000e+00> : vector<8xf32>
    %6 = vector.multi_reduction <add>, %4, %cst [1] : vector<8x1024xf32> to vector<8xf32>
    %7 = vector.shape_cast %6 : vector<8xf32> to vector<8x1xf32>
    %8 = arith.addf %5, %7 : vector<8x1xf32>
    %c0_5 = arith.constant 0 : index
    %c0_6 = arith.constant 0 : index
    %9 = vector.load %arg6[%c0_5, %c0_6] : memref<8x1xf32, #tpu.memory_space<vmem>>, vector<8x1xf32>
    tpu.vector_store %arg6[%c0_5, %c0_6], %8 {strides = array<i32>} : memref<8x1xf32, #tpu.memory_space<vmem>>, vector<8x1xf32>,
    %cst_7 = arith.constant dense<0xFF800000> : vector<8xf32>
    %10 = vector.multi_reduction <maximumf>, %4, %cst_7 [1] : vector<8x1024xf32> to vector<8xf32>
    %11 = vector.shape_cast %10 : vector<8xf32> to vector<8x1xf32>
    %c0_8 = arith.constant 0 : index
    %c0_9 = arith.constant 0 : index
    %12 = vector.load %arg7[%c0_8, %c0_9] : memref<8x1xf32, #tpu.memory_space<vmem>>, vector<8x1xf32>
    %13 = arith.maximumf %12, %11 : vector<8x1xf32>
    %c0_10 = arith.constant 0 : index
    %c0_11 = arith.constant 0 : index
    %14 = vector.load %arg7[%c0_10, %c0_11] : memref<8x1xf32, #tpu.memory_space<vmem>>, vector<8x1xf32>
    tpu.vector_store %arg7[%c0_10, %c0_11], %13 {strides = array<i32>} : memref<8x1xf32, #tpu.memory_space<vmem>>, vector<8x1xf32>,
    %c0_i32_12 = arith.constant 0 : i32
    %15 = arith.cmpi eq, %arg1, %c0_i32_12 : i32
    %16 = arith.extui %15 : i1 to i32
    %c0_i32_13 = arith.constant 0 : i32
    %17 = arith.cmpi ne, %16, %c0_i32_13 : i32
    scf.if %17 {
      %c0_14 = arith.constant 0 : index
      %c0_15 = arith.constant 0 : index
      %18 = vector.load %arg6[%c0_14, %c0_15] : memref<8x1xf32, #tpu.memory_space<vmem>>, vector<8x1xf32>
      %cst_16 = arith.constant 9.765625E-4 : f32
      %19 = vector.broadcast %cst_16 : f32 to vector<8x1xf32>
      %20 = arith.mulf %18, %19 : vector<8x1xf32>
      %c0_17 = arith.constant 0 : index
      %c0_18 = arith.constant 0 : index
      %21 = vector.load %arg7[%c0_17, %c0_18] : memref<8x1xf32, #tpu.memory_space<vmem>>, vector<8x1xf32>
      %22 = tpu.concatenate %20, %21 in 1 : vector<8x1xf32>, vector<8x1xf32> -> vector<8x2xf32>
      %c0_19 = arith.constant 0 : index
      %c0_20 = arith.constant 0 : index
      %23 = vector.load %arg3[%c0_19, %c0_20] : memref<2x8xf32, #tpu.memory_space<vmem>>, vector<2x8xf32>
      %c0_21 = arith.constant 0 : index
      %c0_22 = arith.constant 0 : index
      %24 = vector.load %arg4[%c0_21, %c0_22] : memref<2x8xf32, #tpu.memory_space<vmem>>, vector<2x8xf32>
      %cst_23 = arith.constant dense<0.000000e+00> : vector<2x2xf32>
      %25 = tpu.matmul %23, %22, %cst_23 {dimension_numbers = #tpu.dot_dimension_numbers<[1], [0], [0], [1], [0, 0, 1, 1], [], []>} : vector<2x8xf32>, vector<8x2xf32>, vector<2x2xf32> -> vector<2x2xf32>
      %cst_24 = arith.constant 0.000000e+00 : f32
      %26 = vector.broadcast %cst_24 : f32 to vector<2x2xf32>
      %27 = arith.maximumf %25, %26 : vector<2x2xf32>
      %28 = vector.extract_strided_slice %27 {offsets = [0, 0], sizes = [2, 1], strides = [1, 1]} : vector<2x2xf32> to vector<2x1xf32>
      %29 = vector.extract_strided_slice %27 {offsets = [0, 1], sizes = [2, 1], strides = [1, 1]} : vector<2x2xf32> to vector<2x1xf32>
      %30 = arith.addf %28, %29 : vector<2x1xf32>
      %31 = tpu.transpose %30, [1, 0] : vector<2x1xf32> -> vector<1x2xf32>
      %cst_25 = arith.constant dense<0.000000e+00> : vector<1x8xf32>
      %32 = tpu.matmul %31, %24, %cst_25 {dimension_numbers = #tpu.dot_dimension_numbers<[1], [0], [0], [1], [0, 0, 1, 1], [], []>} : vector<1x2xf32>, vector<2x8xf32>, vector<1x8xf32> -> vector<1x8xf32>
      %33 = arith.negf %32 : vector<1x8xf32>
      %34 = math.exp %33 : vector<1x8xf32>
      %cst_26 = arith.constant 1.000000e+00 : f32
      %35 = vector.broadcast %cst_26 : f32 to vector<1x8xf32>
      %36 = arith.addf %35, %34 : vector<1x8xf32>
      %37 = arith.divf %35, %36 : vector<1x8xf32>
      %c0_27 = arith.constant 0 : index
      %c0_28 = arith.constant 0 : index
      %c0_29 = arith.constant 0 : index
      %38 = vector.load %arg5[%c0_27, %c0_28, %c0_29] : memref<1x1x8xf32, #tpu.memory_space<vmem>>, vector<1x1x8xf32>
      %39 = vector.shape_cast %38 : vector<1x1x8xf32> to vector<1x8xf32>
      %40 = vector.shape_cast %37 : vector<1x8xf32> to vector<1x1x8xf32>
      tpu.vector_store %arg5[%c0_27, %c0_28, %c0_29], %40 {strides = array<i32>} : memref<1x1x8xf32, #tpu.memory_space<vmem>>, vector<1x1x8xf32>,
    } else {
    }
    return
  }
  func.func @transform_0(%arg0: i32, %arg1: i32) -> (i32, i32, i32) {
    %c0_i32 = arith.constant 0 : i32
    %c0_i32_0 = arith.constant 0 : i32
    return %arg0, %c0_i32, %arg1 : i32, i32, i32
  }
  func.func @transform_1(%arg0: i32, %arg1: i32) -> (i32, i32) {
    %c0_i32 = arith.constant 0 : i32
    %c0_i32_0 = arith.constant 0 : i32
    %c0_i32_1 = arith.constant 0 : i32
    return %c0_i32, %c0_i32_0 : i32, i32
  }
  func.func @transform_2(%arg0: i32, %arg1: i32) -> (i32, i32) {
    %c0_i32 = arith.constant 0 : i32
    %c0_i32_0 = arith.constant 0 : i32
    %c0_i32_1 = arith.constant 0 : i32
    return %c0_i32, %c0_i32_0 : i32, i32
  }
  func.func @transform_3(%arg0: i32, %arg1: i32) -> (i32, i32, i32) {
    %c0_i32 = arith.constant 0 : i32
    %c0_i32_0 = arith.constant 0 : i32
    %c0_i32_1 = arith.constant 0 : i32
    return %arg0, %c0_i32, %c0_i32_0 : i32, i32, i32
  }
}

</mosaic_0001>

<llo_original>
// kernel: tpu_custom_call.1
$region0: #{tpu_custom_call.1}
  #allocation0 [shape = 'u32[]', space=smem, size = 0x4, offset = 0x4, fixed_abs, tag = 'smem constant byte address 0x4 - core index']
  #allocation1 [shape = 'u32[144,128]{1,0:T(1,128)}', space=vmem, size = 0x12000, scoped, tag = 'internal scratch']
  #allocation2 [shape = 'f32[8,1]{1,0:T(8,128)}', space=vmem, size = 0x1000, scoped, tag = 'scratch operand']
  #allocation3 [shape = 'f32[8,1]{1,0:T(8,128)}', space=vmem, size = 0x1000, scoped, tag = 'scratch operand']
  %s0 = inlined_call_operand.hbm [shape: f32[2,8,1024], index: 0, kind: input, shape index: {}]
  %s1 = inlined_call_operand.hbm [shape: f32[2,8], index: 1, kind: input, shape index: {}]
  %s2 = inlined_call_operand.vmem [shape: f32[2,8], index: 2, kind: input, shape index: {}]
  %s3 = inlined_call_operand.hbm [shape: f32[2,1,8], index: 3, kind: output, shape index: {}]
  %s4 = sld [smem:[#allocation0]]
  $region61: #{tpu_custom_call.1} parent=0
    _
  %s6 = ssub.s32 1, %s4
  %s7 = scalar_select 0, %s6, %s4
  $region1: #{tpu_custom_call.1} parent=0
    #allocation4 [shape = 'u8[65536]{0}', space=vmem, size = 0x10000, scoped, tag = 'input window, operand 0']
    #allocation5 [shape = 's32[2]{0}', space=sflag, size = 0x8, scoped, tag = 'scoped memory for tpu_custom_call.1']
    #allocation6 [shape = 's32[2]{0}', space=sflag, size = 0x8, scoped, tag = 'scoped memory for tpu_custom_call.1']
    #allocation7 [shape = 'u8[1024]{0}', space=vmem, size = 0x400, scoped, tag = 'input window, operand 1, single buffered']
    #allocation8 [shape = 's32[1]{0}', space=sflag, size = 0x4, scoped, tag = 'scoped memory for tpu_custom_call.1']
    #allocation9 [shape = 'u8[1024]{0}', space=vmem, size = 0x400, scoped, tag = 'output window, operand 0']
    %8 = vsyncpa [#allocation5], 0
    %s9 = scalar_lea.sflag [#allocation5], 1
    %10 = vsyncpa %s9, 0
    %11 = vsyncpa [#allocation8], 0
    %12 = vsyncpa [#allocation6], 0
    %s13 = scalar_lea.sflag [#allocation6], 1
    %14 = vsyncpa %s13, 0
    loop: start=0, step=1, limit=4
    $region2: #{tpu_custom_call.1} parent=1 // loop_pre_header
      _
    $region3: #{tpu_custom_call.1} parent=1 // loop_header
      %s16 = sphi 0, %s20
      %p17 = scmp.ge.s32.totalorder %s16, 4
      %s23 = sphi 0, %s35
      %s24 = sphi 0, %s31
      %s25 = sphi 0, %s23
      %s26 = sphi 0, %s24
      %s27 = sphi 0, %s25
      %s28 = sphi 0, %s26
      %s40 = sphi 0, %s42
      %s43 = sphi 0, %s40
      %s44 = sphi 0, %s43
      %s60 = sphi 0, %s44
      %s64 = sphi 0, %s64
      %s66 = sphi 0, %s64
      %s67 = sphi 0, %s66
      %s81 = sphi 0, %s67
      %s85 = sphi 0, %s85
      %s87 = sphi 0, %s85
      %s88 = sphi 0, %s87
      %s102 = sphi 0, %s88
      %s108 = sphi 0, %s110
      %s111 = sphi 0, %s108
      %s112 = sphi 0, %s111
      %s128 = sphi 0, %s112
    $region4: #{tpu_custom_call.1} parent=1 // loop_header_branch
      %19 = sbr.rel (%p17) target = $region8
    $region5: #{tpu_custom_call.1} parent=1 // loop_body
      %s21 = ssub.s32 %s16, 1
      %s22 = ssub.s32 %s16, 2
      %s29 = sadd.s32 1, %s24
      %p30 = scmp.ge.s32.totalorder %s29, 1
      %s31 = scalar_select %p30, 0, %s29
      %s32 = sadd.s32 1, %s23
      %s33 = scalar_select %p30, %s32, %s23
      %p34 = scmp.ge.s32.totalorder %s33, 2
      %s35 = scalar_select %p34, 0, %s33
      %s36 = ssub.s32 %s23, %s35
      %s37 = ssub.s32 %s24, %s31
      %s38 = sor.u32 %s36, %s37
      %p39 = scmp.eq.s32.totalorder %s38, 0
      %s41 = sadd.s32 %s40, 1
      %s42 = scalar_select %p39, %s40, %s41
      %p45 = pneg %p39
      %p46 = scmp.eq.s32.totalorder %s16, 1
      %p47 = por %p45, %p46
      %p48 = scmp.ne.s32.totalorder %s40, %s43
      %p49 = scmp.eq.s32.totalorder %s16, 0
      %p50 = por %p48, %p49
      %p51 = scmp.ne.s32.totalorder %s40, %s43
      %p52 = scmp.eq.s32.totalorder %s21, 1
      %p53 = por %p51, %p52
      %p54 = scmp.ne.s32.totalorder %s43, %s44
      %p55 = scmp.eq.s32.totalorder %s21, 0
      %p56 = por %p54, %p55
      %p57 = scmp.ne.s32.totalorder %s43, %s44
      %p58 = scmp.eq.s32.totalorder %s22, 1
      %p59 = por %p57, %p58
      %p61 = scmp.ne.s32.totalorder %s44, %s60
      %p62 = scmp.eq.s32.totalorder %s22, 0
      %p63 = por %p61, %p62
      %s65 = sadd.s32 %s64, 1
      %p68 = scmp.eq.s32.totalorder %s16, 1
      %p69 = scmp.ne.s32.totalorder %s64, %s66
      %p70 = scmp.eq.s32.totalorder %s16, 0
      %p71 = por %p69, %p70
      %p72 = scmp.ne.s32.totalorder %s64, %s66
      %p73 = scmp.eq.s32.totalorder %s21, 1
      %p74 = por %p72, %p73
      %p75 = scmp.ne.s32.totalorder %s66, %s67
      %p76 = scmp.eq.s32.totalorder %s21, 0
      %p77 = por %p75, %p76
      %p78 = scmp.ne.s32.totalorder %s66, %s67
      %p79 = scmp.eq.s32.totalorder %s22, 1
      %p80 = por %p78, %p79
      %p82 = scmp.ne.s32.totalorder %s67, %s81
      %p83 = scmp.eq.s32.totalorder %s22, 0
      %p84 = por %p82, %p83
      %s86 = sadd.s32 %s85, 1
      %p89 = scmp.eq.s32.totalorder %s16, 1
      %p90 = scmp.ne.s32.totalorder %s85, %s87
      %p91 = scmp.eq.s32.totalorder %s16, 0
      %p92 = por %p90, %p91
      %p93 = scmp.ne.s32.totalorder %s85, %s87
      %p94 = scmp.eq.s32.totalorder %s21, 1
      %p95 = por %p93, %p94
      %p96 = scmp.ne.s32.totalorder %s87, %s88
      %p97 = scmp.eq.s32.totalorder %s21, 0
      %p98 = por %p96, %p97
      %p99 = scmp.ne.s32.totalorder %s87, %s88
      %p100 = scmp.eq.s32.totalorder %s22, 1
      %p101 = por %p99, %p100
      %p103 = scmp.ne.s32.totalorder %s88, %s102
      %p104 = scmp.eq.s32.totalorder %s22, 0
      %p105 = por %p103, %p104
      %s106 = ssub.s32 %s23, %s35
      %p107 = scmp.eq.s32.totalorder %s106, 0
      %s109 = sadd.s32 %s108, 1
      %s110 = scalar_select %p107, %s108, %s109
      %p113 = pneg %p107
      %p114 = scmp.eq.s32.totalorder %s16, 1
      %p115 = por %p113, %p114
      %p116 = scmp.ne.s32.totalorder %s108, %s111
      %p117 = scmp.eq.s32.totalorder %s16, 0
      %p118 = por %p116, %p117
      %p119 = scmp.ne.s32.totalorder %s108, %s111
      %p120 = scmp.eq.s32.totalorder %s21, 1
      %p121 = por %p119, %p120
      %p122 = scmp.ne.s32.totalorder %s111, %s112
      %p123 = scmp.eq.s32.totalorder %s21, 0
      %p124 = por %p122, %p123
      %p125 = scmp.ne.s32.totalorder %s111, %s112
      %p126 = scmp.eq.s32.totalorder %s22, 1
      %p127 = por %p125, %p126
      %p129 = scmp.ne.s32.totalorder %s112, %s128
      %p130 = scmp.eq.s32.totalorder %s22, 0
      %p131 = por %p129, %p130
      %p132 = scmp.le.s32.totalorder 1, %s16
      %p133 = scmp.lt.s32.totalorder %s16, 3
      %p134 = pnand %p132, %p133
      %p135 = pneg %p134
      // Predicated region
      $region9: #{tpu_custom_call.1} parent=5 // pred_check
        _
      $region10: #{tpu_custom_call.1} parent=5 // pred_check_branch
        %137 = sbr.rel (%p134) target = $region12
      $region11: #{tpu_custom_call.1} parent=5 // pred_region
        %s138 = ssub.s32 %s16, 1
        // Predicated region
        $region13: #{tpu_custom_call.1} parent=11 // pred_check
          %p139 = pneg %p77
        $region14: #{tpu_custom_call.1} parent=11 // pred_check_branch
          %141 = sbr.rel (%p139) target = $region16
        $region15: #{tpu_custom_call.1} parent=11 // pred_region
          %s143 = ssub.s32 32, 32
          %144 = vsyncadd [#allocation8], %s143
          %s146 = sshll.u32 [#allocation7], 4
          %s147 = int_to_ptr.vmem [resolvable:$true] %s146
          %149 = dma.hbm_to_vmem [thread:$0]  %s1, 32, %s147, [#allocation8]
        $region16: #{tpu_custom_call.1} parent=11 // pred_fallthru
          _
        // Predicated region
        $region17: #{tpu_custom_call.1} parent=11 // pred_check
          %p150 = pneg %p98
        $region18: #{tpu_custom_call.1} parent=11 // pred_check_branch
          %152 = sbr.rel (%p150) target = $region20
        $region19: #{tpu_custom_call.1} parent=11 // pred_region
          _
        $region20: #{tpu_custom_call.1} parent=11 // pred_fallthru
          _
      $region12: #{tpu_custom_call.1} parent=5 // pred_fallthru
        _
      %p153 = scmp.lt.s32.totalorder %s16, 2
      // Predicated region
      $region21: #{tpu_custom_call.1} parent=5 // pred_check
        %p154 = pneg %p153
      $region22: #{tpu_custom_call.1} parent=5 // pred_check_branch
        %156 = sbr.rel (%p154) target = $region24
      $region23: #{tpu_custom_call.1} parent=5 // pred_region
        // Predicated region
        $region25: #{tpu_custom_call.1} parent=23 // pred_check
          %p157 = pneg %p50
        $region26: #{tpu_custom_call.1} parent=23 // pred_check_branch
          %159 = sbr.rel (%p157) target = $region28
        $region27: #{tpu_custom_call.1} parent=23 // pred_region
          %s160 = sand.u32 %s40, 1
          %s161 = scalar_lea.sflag [#allocation5], %s160
          %s162 = sand.u32 %s40, 1
          %s163 = smul.addr %s162, 64
          %s164 = scalar_lea.vmem [#allocation4], %s163
          %s165 = smul.u32 8, %s24
          %s167 = ssub.s32 1024, 1024
          %168 = vsyncadd %s161, %s167
          %s169 = smul.addr %s23, 8
          %s170 = sadd.s32 %s165, %s169
          %s171 = smul.addr %s170, 128
          %s172 = scalar_lea.hbm %s0, %s171
          %s174 = sshll.u32 %s164, 4
          %s175 = int_to_ptr.vmem [resolvable:$true] %s174
          %177 = dma.hbm_to_vmem [thread:$0]  %s172, 1024, %s175, %s161
        $region28: #{tpu_custom_call.1} parent=23 // pred_fallthru
          _
      $region24: #{tpu_custom_call.1} parent=5 // pred_fallthru
        _
      %p178 = scmp.le.s32.totalorder 1, %s16
      %p179 = scmp.lt.s32.totalorder %s16, 3
      %p180 = pnand %p178, %p179
      %p181 = pneg %p180
      // Predicated region
      $region29: #{tpu_custom_call.1} parent=5 // pred_check
        _
      $region30: #{tpu_custom_call.1} parent=5 // pred_check_branch
        %183 = sbr.rel (%p180) target = $region32
      $region31: #{tpu_custom_call.1} parent=5 // pred_region
        %s184 = ssub.s32 %s16, 1
        %s185 = sand.u32 %s43, 1
        %s186 = scalar_lea.sflag [#allocation5], %s185
        %s187 = sand.u32 %s43, 1
        %s188 = smul.addr %s187, 64
        %s189 = scalar_lea.vmem [#allocation4], %s188
        // Predicated region
        $region33: #{tpu_custom_call.1} parent=31 // pred_check
          %p190 = pneg %p56
        $region34: #{tpu_custom_call.1} parent=31 // pred_check_branch
          %192 = sbr.rel (%p190) target = $region36
        $region35: #{tpu_custom_call.1} parent=31 // pred_region
          %193 = dma.done %s186, 1024
        $region36: #{tpu_custom_call.1} parent=31 // pred_fallthru
          _
        // Predicated region
        $region37: #{tpu_custom_call.1} parent=31 // pred_check
          %p194 = pneg %p77
        $region38: #{tpu_custom_call.1} parent=31 // pred_check_branch
          %196 = sbr.rel (%p194) target = $region40
        $region39: #{tpu_custom_call.1} parent=31 // pred_region
          %197 = dma.done [#allocation8], 32
        $region40: #{tpu_custom_call.1} parent=31 // pred_fallthru
          _
        %s198 = sand.u32 %s43, 1
        %s199 = scalar_lea.sflag [#allocation5], %s198
        %s200 = sand.u32 %s43, 1
        %s201 = smul.addr %s200, 64
        %s202 = scalar_lea.vmem [#allocation4], %s201
        %p203 = pneg %p56
        %p204 = pneg %p53
        %p205 = pneg %p77
        %p206 = pneg %p74
        %p207 = pneg %p98
        %p208 = pneg %p95
        %p209 = pneg %p124
        %p210 = pneg %p121
        %s211 = sand.u32 %s111, 1
        %s212 = scalar_lea.sflag [#allocation6], %s211
        %s213 = sand.u32 %s111, 1
        %s214 = scalar_lea.vmem [#allocation9], %s213
        %s215 = smul.u32 8, %s26
        %p216 = scmp.eq.s32.totalorder %s26, 0
        // Predicated region
        $region41: #{tpu_custom_call.1} parent=31 // pred_check
          %p217 = pneg %p216
        $region42: #{tpu_custom_call.1} parent=31 // pred_check_branch
          %219 = sbr.rel (%p217) target = $region44
        $region43: #{tpu_custom_call.1} parent=31 // pred_region
          %vm220 = vcmask 7168
          %221 = vst.msk [vmem:[#allocation2] sm:$0xff] %vm220, 0.0
          %222 = vst.msk [vmem:[#allocation3] sm:$0xff] %vm220, -inf
        $region44: #{tpu_custom_call.1} parent=31 // pred_fallthru
          _
        %v223 = vld [vmem:[%s189] sm:$0xff]
        %v224 = vld [vmem:[%s189 + $0x8] sm:$0xff]
        %v225 = vld [vmem:[%s189 + $0x10] sm:$0xff]
        %v226 = vld [vmem:[%s189 + $0x18] sm:$0xff]
        %v227 = vld [vmem:[%s189 + $0x20] sm:$0xff]
        %v228 = vld [vmem:[%s189 + $0x28] sm:$0xff]
        %v229 = vld [vmem:[%s189 + $0x30] sm:$0xff]
        %v230 = vld [vmem:[%s189 + $0x38] sm:$0xff]
        %v231 = vld [vmem:[#allocation2] sm:$0xff]
        %v232 = vadd.f32 %v223, %v224
        %v233 = vadd.f32 %v232, %v225
        %v234 = vadd.f32 %v233, %v226
        %v235 = vadd.f32 %v234, %v227
        %v236 = vadd.f32 %v235, %v228
        %v237 = vadd.f32 %v236, %v229
        %v238 = vadd.f32 %v237, %v230
        %239 = vadd.xlane.f32.xlu0 %v238
        %v240 = vpop.xlane.xlu0 %239
        %v241 = vadd.f32 %v231, %v240
        %vm242 = vcmask 7168
        %243 = vst.msk [vmem:[#allocation2] sm:$0xff] %vm242, %v241
        %v244 = vmax.f32 %v223, %v227
        %v245 = vmax.f32 %v224, %v228
        %v246 = vmax.f32 %v225, %v229
        %v247 = vmax.f32 %v226, %v230
        %v248 = vmax.f32 %v244, %v245
        %v249 = vmax.f32 %v246, %v247
        %v250 = vmax.f32 %v248, %v249
        %251 = vmax.xlane.f32.xlu0 %v250
        %v252 = vpop.xlane.xlu0 %251
        %v253 = vld [vmem:[#allocation3] sm:$0xff]
        %v254 = vmax.f32 %v253, %v252
        %255 = vst.msk [vmem:[#allocation3] sm:$0xff] %vm242, %v254
        // Predicated region
        $region45: #{tpu_custom_call.1} parent=31 // pred_check
          %p256 = pneg %p216
        $region46: #{tpu_custom_call.1} parent=31 // pred_check_branch
          %258 = sbr.rel (%p256) target = $region48
        $region47: #{tpu_custom_call.1} parent=31 // pred_region
          %v259 = vld [vmem:[#allocation2] sm:$0xff]
          %v260 = vmul.f32 %v259, 0.0009765625
          %v261 = vld [vmem:[#allocation3] sm:$0xff]
          %263 = vrot.lane.b32.xlu0 %v261, 1
          %v264 = vpop.permute.xlu0 %263
          %v266 = vsel %vm242, %v260, %v264
          %v267 = vld [vmem:[#allocation7] sm:$0x3]
          %v268 = vld [vmem:[%s2] sm:$0x3]
          %vm269 = vcmask 64512
          %v271 = vsel %vm269, %v267, 0
          %273 = vmatprep.subr.mxu0 0.0
          %274 = vmatpush1.msra.mxu0 0.0
          %275 = vmatprep.subr.mxu0 0.0
          %276 = vmatpush1.msra.mxu0 0.0
          %277 = vmatprep.subr.mxu0 0.0
          %278 = vmatpush1.msra.mxu0 0.0
          %279 = vmatprep.subr.mxu0 0.0
          %280 = vmatpush1.msra.mxu0 0.0
          %281 = vmatprep.subr.mxu0 0.0
          %282 = vmatpush1.msra.mxu0 0.0
          %283 = vmatprep.subr.mxu0 0.0
          %284 = vmatpush1.msra.mxu0 0.0
          %285 = vmatprep.subr.mxu0 0.0
          %286 = vmatpush1.msra.mxu0 0.0
          %287 = vmatprep.subr.mxu0 0.0
          %288 = vmatpush1.msra.mxu0 0.0
          %289 = vmatprep.subr.mxu0 0.0
          %290 = vmatpush1.msra.mxu0 0.0
          %291 = vmatprep.subr.mxu0 0.0
          %292 = vmatpush1.msra.mxu0 0.0
          %293 = vmatprep.subr.mxu0 0.0
          %294 = vmatpush1.msra.mxu0 0.0
          %295 = vmatprep.subr.mxu0 0.0
          %296 = vmatpush1.msra.mxu0 0.0
          %297 = vmatprep.subr.mxu0 0.0
          %298 = vmatpush1.msra.mxu0 0.0
          %299 = vmatprep.subr.mxu0 0.0
          %300 = vmatpush1.msra.mxu0 0.0
          %301 = vmatprep.subr.mxu0 0.0
          %302 = vmatpush1.msra.mxu0 0.0
          %303 = vmatprep.subr.mxu0 0.0
          %304 = vmatpush1.msra.mxu0 %v266
          %305 = vmatprep.subr.mxu0 0.0
          %306 = vmatpush2.msra.mxu0 0.0
          %307 = vmatprep.subr.mxu0 0.0
          %308 = vmatpush2.msra.mxu0 0.0
          %309 = vmatprep.subr.mxu0 0.0
          %310 = vmatpush2.msra.mxu0 0.0
          %311 = vmatprep.subr.mxu0 0.0
          %312 = vmatpush2.msra.mxu0 0.0
          %313 = vmatprep.subr.mxu0 0.0
          %314 = vmatpush2.msra.mxu0 0.0
          %315 = vmatprep.subr.mxu0 0.0
          %316 = vmatpush2.msra.mxu0 0.0
          %317 = vmatprep.subr.mxu0 0.0
          %318 = vmatpush2.msra.mxu0 0.0
          %319 = vmatprep.subr.mxu0 0.0
          %320 = vmatpush2.msra.mxu0 0.0
          %321 = vmatprep.subr.mxu0 0.0
          %322 = vmatpush2.msra.mxu0 0.0
          %323 = vmatprep.subr.mxu0 0.0
          %324 = vmatpush2.msra.mxu0 0.0
          %325 = vmatprep.subr.mxu0 0.0
          %326 = vmatpush2.msra.mxu0 0.0
          %327 = vmatprep.subr.mxu0 0.0
          %328 = vmatpush2.msra.mxu0 0.0
          %329 = vmatprep.subr.mxu0 0.0
          %330 = vmatpush2.msra.mxu0 0.0
          %331 = vmatprep.subr.mxu0 0.0
          %332 = vmatpush2.msra.mxu0 0.0
          %333 = vmatprep.subr.mxu0 0.0
          %334 = vmatpush2.msra.mxu0 0.0
          %335 = vmatprep.subr.mxu0 0.0
          %336 = vmatpush2.msra.mxu0 0.0
          %337 = vmatprep.mubr.f32.mxu0 0.0
          %338 = vmatmul.mubr.f32.gmra.mxu0 %v271
          %v339 = vpop.f32.mrf.mxu0
          %v340 = vadd.f32 0.0, %v339
          %v341 = vpop.f32.mrf.mxu0
          %342 = vdwg.mxu0
          %v343 = vmax.f32 %v340, 0.0
          %345 = vrot.lane.b32.xlu0 %v343, 127
          %v346 = vpop.permute.xlu0 %345
          %v348 = vadd.f32 %v343, %v346
          %349 = vxpose.xlu0.b32.start [1/16] %v348, 128
          %350 = vxpose.xlu0.b32.cont [2/16] 0.0, 128
          %351 = vxpose.xlu0.b32.cont [3/16] 0.0, 128
          %352 = vxpose.xlu0.b32.cont [4/16] 0.0, 128
          %353 = vxpose.xlu0.b32.cont [5/16] 0.0, 128
          %354 = vxpose.xlu0.b32.cont [6/16] 0.0, 128
          %355 = vxpose.xlu0.b32.cont [7/16] 0.0, 128
          %356 = vxpose.xlu0.b32.cont [8/16] 0.0, 128
          %357 = vxpose.xlu0.b32.cont [9/16] 0.0, 128
          %358 = vxpose.xlu0.b32.cont [10/16] 0.0, 128
          %359 = vxpose.xlu0.b32.cont [11/16] 0.0, 128
          %360 = vxpose.xlu0.b32.cont [12/16] 0.0, 128
          %361 = vxpose.xlu0.b32.cont [13/16] 0.0, 128
          %362 = vxpose.xlu0.b32.cont [14/16] 0.0, 128
          %363 = vxpose.xlu0.b32.cont [15/16] 0.0, 128
          %364 = vxpose.xlu0.b32.end [16/16] 0.0, 128
          %v365 = vpop.trf.xlu0
          %v366 = vpop.trf.xlu0
          %v367 = vpop.trf.xlu0
          %v368 = vpop.trf.xlu0
          %v369 = vpop.trf.xlu0
          %v370 = vpop.trf.xlu0
          %v371 = vpop.trf.xlu0
          %v372 = vpop.trf.xlu0
          %v373 = vpop.trf.xlu0
          %v374 = vpop.trf.xlu0
          %v375 = vpop.trf.xlu0
          %v376 = vpop.trf.xlu0
          %v377 = vpop.trf.xlu0
          %v378 = vpop.trf.xlu0
          %v379 = vpop.trf.xlu0
          %v380 = vpop.trf.xlu0
          %vm381 = vcmask 15360
          %v383 = vsel %vm381, %v365, 0
          %vm385 = vcmask 1041408
          %v387 = vsel %vm385, %v268, 0
          %389 = vmatprep.subr.mxu0 0.0
          %390 = vmatpush1.msra.mxu0 0.0
          %391 = vmatprep.subr.mxu0 0.0
          %392 = vmatpush1.msra.mxu0 0.0
          %393 = vmatprep.subr.mxu0 0.0
          %394 = vmatpush1.msra.mxu0 0.0
          %395 = vmatprep.subr.mxu0 0.0
          %396 = vmatpush1.msra.mxu0 0.0
          %397 = vmatprep.subr.mxu0 0.0
          %398 = vmatpush1.msra.mxu0 0.0
          %399 = vmatprep.subr.mxu0 0.0
          %400 = vmatpush1.msra.mxu0 0.0
          %401 = vmatprep.subr.mxu0 0.0
          %402 = vmatpush1.msra.mxu0 0.0
          %403 = vmatprep.subr.mxu0 0.0
          %404 = vmatpush1.msra.mxu0 0.0
          %405 = vmatprep.subr.mxu0 0.0
          %406 = vmatpush1.msra.mxu0 0.0
          %407 = vmatprep.subr.mxu0 0.0
          %408 = vmatpush1.msra.mxu0 0.0
          %409 = vmatprep.subr.mxu0 0.0
          %410 = vmatpush1.msra.mxu0 0.0
          %411 = vmatprep.subr.mxu0 0.0
          %412 = vmatpush1.msra.mxu0 0.0
          %413 = vmatprep.subr.mxu0 0.0
          %414 = vmatpush1.msra.mxu0 0.0
          %415 = vmatprep.subr.mxu0 0.0
          %416 = vmatpush1.msra.mxu0 0.0
          %417 = vmatprep.subr.mxu0 0.0
          %418 = vmatpush1.msra.mxu0 0.0
          %419 = vmatprep.subr.mxu0 0.0
          %420 = vmatpush1.msra.mxu0 %v387
          %421 = vmatprep.subr.mxu0 0.0
          %422 = vmatpush2.msra.mxu0 0.0
          %423 = vmatprep.subr.mxu0 0.0
          %424 = vmatpush2.msra.mxu0 0.0
          %425 = vmatprep.subr.mxu0 0.0
          %426 = vmatpush2.msra.mxu0 0.0
          %427 = vmatprep.subr.mxu0 0.0
          %428 = vmatpush2.msra.mxu0 0.0
          %429 = vmatprep.subr.mxu0 0.0
          %430 = vmatpush2.msra.mxu0 0.0
          %431 = vmatprep.subr.mxu0 0.0
          %432 = vmatpush2.msra.mxu0 0.0
          %433 = vmatprep.subr.mxu0 0.0
          %434 = vmatpush2.msra.mxu0 0.0
          %435 = vmatprep.subr.mxu0 0.0
          %436 = vmatpush2.msra.mxu0 0.0
          %437 = vmatprep.subr.mxu0 0.0
          %438 = vmatpush2.msra.mxu0 0.0
          %439 = vmatprep.subr.mxu0 0.0
          %440 = vmatpush2.msra.mxu0 0.0
          %441 = vmatprep.subr.mxu0 0.0
          %442 = vmatpush2.msra.mxu0 0.0
          %443 = vmatprep.subr.mxu0 0.0
          %444 = vmatpush2.msra.mxu0 0.0
          %445 = vmatprep.subr.mxu0 0.0
          %446 = vmatpush2.msra.mxu0 0.0
          %447 = vmatprep.subr.mxu0 0.0
          %448 = vmatpush2.msra.mxu0 0.0
          %449 = vmatprep.subr.mxu0 0.0
          %450 = vmatpush2.msra.mxu0 0.0
          %451 = vmatprep.subr.mxu0 0.0
          %452 = vmatpush2.msra.mxu0 0.0
          %453 = vmatprep.mubr.f32.mxu0 0.0
          %454 = vmatmul.mubr.f32.gmra.mxu0 %v383
          %v455 = vpop.f32.mrf.mxu0
          %v456 = vadd.f32 0.0, %v455
          %v457 = vpop.f32.mrf.mxu0
          %458 = vdwg.mxu0
          %v459 = vxor.u32 %v456, 2147483648
          %v460 = vmul.f32 %v459, 1.442695
          %v461 = vpow.pop %v460
          %v462 = vadd.f32 %v461, 1.0
          %v463 = vrcp.pop %v462
          %v464 = vmul.f32 1.0, %v463
          %vm465 = vcmask 57344
          %466 = vst.msk [vmem:[%s214] sm:$0x1] %vm465, %v464
        $region48: #{tpu_custom_call.1} parent=31 // pred_fallthru
          _
        %s467 = sand.u32 %s111, 1
        %s468 = scalar_lea.sflag [#allocation6], %s467
        %s469 = sand.u32 %s111, 1
        %s470 = scalar_lea.vmem [#allocation9], %s469
        // Predicated region
        $region49: #{tpu_custom_call.1} parent=31 // pred_check
          %p471 = pneg %p121
        $region50: #{tpu_custom_call.1} parent=31 // pred_check_branch
          %473 = sbr.rel (%p471) target = $region52
        $region51: #{tpu_custom_call.1} parent=31 // pred_region
          %s475 = ssub.s32 16, 16
          %476 = vsyncadd %s468, %s475
          %s477 = smul.addr %s25, 16
          %s478 = scalar_lea.hbm %s3, %s477
          %s480 = sshll.u32 %s470, 4
          %s481 = int_to_ptr.vmem [resolvable:$true] %s480
          %483 = dma.vmem_to_hbm [thread:$0]  %s481, 16, %s478, %s468
        $region52: #{tpu_custom_call.1} parent=31 // pred_fallthru
          _
      $region32: #{tpu_custom_call.1} parent=5 // pred_fallthru
        _
      %p484 = scmp.le.s32.totalorder 2, %s16
      // Predicated region
      $region53: #{tpu_custom_call.1} parent=5 // pred_check
        %p485 = pneg %p484
      $region54: #{tpu_custom_call.1} parent=5 // pred_check_branch
        %487 = sbr.rel (%p485) target = $region56
      $region55: #{tpu_custom_call.1} parent=5 // pred_region
        %s488 = ssub.s32 %s16, 2
        // Predicated region
        $region57: #{tpu_custom_call.1} parent=55 // pred_check
          %p489 = pneg %p127
        $region58: #{tpu_custom_call.1} parent=55 // pred_check_branch
          %491 = sbr.rel (%p489) target = $region60
        $region59: #{tpu_custom_call.1} parent=55 // pred_region
          %s492 = sand.u32 %s112, 1
          %s493 = scalar_lea.sflag [#allocation6], %s492
          %s494 = sand.u32 %s112, 1
          %s495 = scalar_lea.vmem [#allocation9], %s494
          %496 = dma.done %s493, 16
        $region60: #{tpu_custom_call.1} parent=55 // pred_fallthru
          _
      $region56: #{tpu_custom_call.1} parent=5 // pred_fallthru
        _
    $region6: #{tpu_custom_call.1} parent=1 // loop_footer
      %s20 = sadd.s32 1, %s16
    $region7: #{tpu_custom_call.1} parent=1 // loop_footer_branch
      %15 = sbr.rel target = $region3
    $region8: #{tpu_custom_call.1} parent=1 // loop_exit
      _
    %497 = vsyncpa [#allocation5], 1
    %s498 = scalar_lea.sflag [#allocation5], 1
    %499 = vsyncpa %s498, 1
    %500 = vsyncpa [#allocation8], 1
    %501 = vsyncpa [#allocation6], 1
    %s502 = scalar_lea.sflag [#allocation6], 1
    %503 = vsyncpa %s502, 1

</llo_original>
